<compile_context>
chip_gen: v7x
topology: tpu7x:2x2x1
jax: 0.10.0
libtpu: 0.0.40
codegen_flags: <defaults>
</compile_context>

<pallas_src>
import jax
import jax.numpy as jnp
from jax.experimental import pallas as pl
from jax.experimental.pallas import tpu as pltpu


def _copy_kernel(x_ref, o_ref):
    # Pure 2-D identity copy of a lane/sublane-dense tile: unmasked vld/vst only.
    o_ref[...] = x_ref[...]


def _largest_divisor_multiple_of(dim, base, cap):
    """Largest t with dim % t == 0, t % base == 0 and t <= min(dim, cap); else None."""
    best = None
    t = base
    limit = min(dim, cap)
    while t <= limit:
        if dim % t == 0:
            best = t
        t += base
    return best


_SUBLANE_PACK = {1: 32, 2: 16, 4: 8}


def _pick_layout(n, flat, itemsize, max_block_bytes):
    """Choose (slab_shape, block_shape) for the identity copy.

    The copy is contiguous and byte-identical, so we are free to re-factor
    total = n * flat into any 2-D slab; the wrapper reshapes back afterwards.
    """
    total = n * flat
    pack = _SUBLANE_PACK.get(itemsize, 8)
    budget_elems = max(pack * 128, max_block_bytes // itemsize)

    if total % 128 == 0:
        # Lane-dense slab.  Prefer a lane width L that also leaves the row
        # count divisible by the dtype sublane pack (fully dense vregs).
        for L in (2048, 1024, 512, 256, 128):
            if total % L == 0 and (total // L) % pack == 0:
                rows = total // L
                cap_r = max(pack, min(rows, budget_elems // L))
                tile_r = _largest_divisor_multiple_of(rows, pack, cap_r) or pack
                # Megacore (v7x): prefer >= 2 grid steps along the parallel axis
                # when the halved block is still a meaty (>= 1 MiB) copy.
                if tile_r == rows and rows > pack:
                    half = _largest_divisor_multiple_of(
                        rows, pack, max(pack, rows // 2))
                    if half is not None and half * L * itemsize >= (1 << 20):
                        tile_r = half
                return (rows, L), (tile_r, L)
        # 128-aligned total, but no factorization gives a sublane-packed row
        # count: use a single sublane row and tile along lanes only (still
        # unmasked, lane-dense stores) — budget-guarded.
        cap_l = max(128, min(total, budget_elems))
        tile_l = _largest_divisor_multiple_of(total, 128, cap_l) or 128
        return (1, total), (1, tile_l)

    # total % 128 != 0  (hence flat % 128 != 0 too): keep the natural (n, flat)
    # factorization.  The (8,128)/full-dim rule forces the full feature extent
    # in the last block dim; the batch tile still respects the byte budget and
    # the caller scales the scoped VMEM limit from the actual block size.
    tile_f = flat
    if n % pack == 0:
        cap_n = max(pack, budget_elems // max(1, tile_f))
        tile_n = _largest_divisor_multiple_of(n, pack, cap_n) or pack
    else:
        tile_n = n  # full-dim rule.
    return (n, flat), (tile_n, tile_f)


def flatten(x, *, max_block_bytes=8 * 1024 * 1024):
    """Equivalent of torch `x.view(x.size(0), -1)` for an N-D input."""
    n = x.shape[0]
    flat = 1
    for d in x.shape[1:]:
        flat *= d

    itemsize = jnp.dtype(x.dtype).itemsize
    slab_shape, block_shape = _pick_layout(n, flat, itemsize, max_block_bytes)
    grid = (slab_shape[0] // block_shape[0], slab_shape[1] // block_shape[1])

    # Metadata-only reshape to the lane-dense slab (row-major == .view order).
    x_slab = x.reshape(slab_shape)

    # Scoped VMEM: 2 double-buffers each for input and output blocks + slack,
    # floored at 40 MiB and capped below the physical per-core VMEM.
    block_bytes = block_shape[0] * block_shape[1] * itemsize
    try:
        phys_vmem = pltpu.get_tpu_info().vmem_capacity_bytes
    except Exception:
        phys_vmem = 64 * 1024 * 1024  # conservative (v7x per-core) default
    vmem_limit = int(min(phys_vmem - (8 << 20),
                         max(40 << 20, 4 * block_bytes + (4 << 20))))

    out_slab = pl.pallas_call(
        _copy_kernel,
        out_shape=jax.ShapeDtypeStruct(slab_shape, x.dtype),
        grid_spec=pltpu.PrefetchScalarGridSpec(
            num_scalar_prefetch=0,
            grid=grid,
            in_specs=[pl.BlockSpec(block_shape, lambda i, j: (i, j))],
            out_specs=pl.BlockSpec(block_shape, lambda i, j: (i, j)),
        ),
        # Donate the (identical shape/dtype) input slab: halves peak HBM
        # footprint, no second (N, C*H*W) buffer.
        input_output_aliases={0: 0},
        compiler_params=pltpu.CompilerParams(
            dimension_semantics=("parallel", "parallel"),
            vmem_limit_bytes=vmem_limit,
        ),
    )(x_slab)

    # Metadata-only reshape back to the flattened (N, C*H*W) view.
    return out_slab.reshape(n, flat)


if __name__ == "__main__":
    key = jax.random.PRNGKey(0)
    # SMALL shape consistent with the module's forward (any N-D input works).
    x = jax.random.normal(key, (2, 4, 16, 16), dtype=jnp.float32)

    # Reference first (plain JAX reshape == torch .view(N, -1) semantics).
    y_ref = x.reshape(x.shape[0], -1)

    y = flatten(x)
    jax.block_until_ready(y)

    assert y.shape == (2, 4 * 16 * 16), y.shape
    assert y.dtype == x.dtype
    assert jnp.array_equal(y, y_ref), "Pallas flatten mismatch vs reference"

    print("KERNEL_OK")
</pallas_src>

<mosaic_0001>
module attributes {stable_mosaic.version = 11 : i64} {
  func.func @_copy_kernel(%arg0: i32, %arg1: i32, %arg2: memref<8x256xf32, #tpu.memory_space<vmem>>, %arg3: memref<8x256xf32, #tpu.memory_space<vmem>>) attributes {dimension_semantics = [#tpu.dimension_semantics<parallel>, #tpu.dimension_semantics<parallel>], iteration_bounds = array<i64: 1, 1>, scalar_prefetch = 0 : i64, scratch_operands = 0 : i64, tpu.core_type = #tpu.core_type<tc>, window_params = [{transform_indices = @transform_0, window_bounds = array<i64: 8, 256>}, {transform_indices = @transform_1, window_bounds = array<i64: 8, 256>}]} {
    %c0 = arith.constant 0 : index
    %c0_0 = arith.constant 0 : index
    %0 = vector.load %arg2[%c0, %c0_0] : memref<8x256xf32, #tpu.memory_space<vmem>>, vector<8x256xf32>
    %c0_1 = arith.constant 0 : index
    %c0_2 = arith.constant 0 : index
    %1 = vector.load %arg3[%c0_1, %c0_2] : memref<8x256xf32, #tpu.memory_space<vmem>>, vector<8x256xf32>
    tpu.vector_store %arg3[%c0_1, %c0_2], %0 {strides = array<i32>} : memref<8x256xf32, #tpu.memory_space<vmem>>, vector<8x256xf32>,
    return
  }
  func.func @transform_0(%arg0: i32, %arg1: i32) -> (i32, i32) {
    %c0_i32 = arith.constant 0 : i32
    return %arg0, %arg1 : i32, i32
  }
  func.func @transform_1(%arg0: i32, %arg1: i32) -> (i32, i32) {
    %c0_i32 = arith.constant 0 : i32
    return %arg0, %arg1 : i32, i32
  }
}

</mosaic_0001>

<llo_original>
// kernel: tpu_custom_call.1
$region0: #{tpu_custom_call.1}
  #allocation0 [shape = 'u32[]', space=smem, size = 0x4, offset = 0x4, fixed_abs, tag = 'smem constant byte address 0x4 - core index']
  #allocation1 [shape = 'u32[144,128]{1,0:T(1,128)}', space=vmem, size = 0x12000, scoped, tag = 'internal scratch']
  %s0 = inlined_call_operand.hbm [shape: f32[8,256], index: 0, kind: input, shape index: {}, may-alias: {0,1}]
  %s1 = inlined_call_operand.hbm [shape: f32[8,256], index: 1, kind: output, shape index: {}, may-alias: {0,1}]
  %s2 = sld [smem:[#allocation0]]
  $region18: #{tpu_custom_call.1} parent=0
    _
  %s4 = ssub.s32 1, %s2
  %s5 = scalar_select 0, %s4, %s2
  $region1: #{tpu_custom_call.1} parent=0
    #allocation2 [shape = 'u8[8192]{0}', space=vmem, size = 0x2000, scoped, tag = 'input window, operand 0, single buffered']
    #allocation3 [shape = 's32[1]{0}', space=sflag, size = 0x4, scoped, tag = 'scoped memory for tpu_custom_call.1']
    #allocation4 [shape = 's32[1]{0}', space=sflag, size = 0x4, scoped, tag = 'scoped memory for tpu_custom_call.1']
    #allocation5 [shape = 'u8[8192]{0}', space=vmem, size = 0x2000, scoped, tag = 'output window, operand 0, single buffered']
    %6 = vsyncpa [#allocation3], 0
    %7 = vsyncpa [#allocation4], 0
    // Predicated region
    $region2: #{tpu_custom_call.1} parent=1 // pred_check
      _
    $region3: #{tpu_custom_call.1} parent=1 // pred_check_branch
      %9 = sbr.rel (0) target = $region5
    $region4: #{tpu_custom_call.1} parent=1 // pred_region
      %s11 = ssub.s32 256, 256
      %12 = vsyncadd [#allocation3], %s11
      %s14 = sshll.u32 [#allocation2], 4
      %s15 = int_to_ptr.vmem [resolvable:$true] %s14
      %17 = dma.hbm_to_vmem [thread:$0]  %s0, 256, %s15, [#allocation3]
    $region5: #{tpu_custom_call.1} parent=1 // pred_fallthru
      _
    // Predicated region
    $region6: #{tpu_custom_call.1} parent=1 // pred_check
      _
    $region7: #{tpu_custom_call.1} parent=1 // pred_check_branch
      %19 = sbr.rel (0) target = $region9
    $region8: #{tpu_custom_call.1} parent=1 // pred_region
      %20 = dma.done [#allocation3], 256
    $region9: #{tpu_custom_call.1} parent=1 // pred_fallthru
      _
    %v21 = vld [vmem:[#allocation2] sm:$0xff]
    %v22 = vld [vmem:[#allocation2 + $0x8] sm:$0xff]
    %23 = vst [vmem:[#allocation5] sm:$0xff] %v21
    %24 = vst [vmem:[#allocation5 + $0x8] sm:$0xff] %v22
    // Predicated region
    $region10: #{tpu_custom_call.1} parent=1 // pred_check
      _
    $region11: #{tpu_custom_call.1} parent=1 // pred_check_branch
      %26 = sbr.rel (0) target = $region13
    $region12: #{tpu_custom_call.1} parent=1 // pred_region
      %s28 = ssub.s32 256, 256
      %29 = vsyncadd [#allocation4], %s28
      %s31 = sshll.u32 [#allocation5], 4
      %s32 = int_to_ptr.vmem [resolvable:$true] %s31
      %34 = dma.vmem_to_hbm [thread:$0]  %s32, 256, %s1, [#allocation4]
    $region13: #{tpu_custom_call.1} parent=1 // pred_fallthru
      _
    // Predicated region
    $region14: #{tpu_custom_call.1} parent=1 // pred_check
      _
    $region15: #{tpu_custom_call.1} parent=1 // pred_check_branch
      %36 = sbr.rel (0) target = $region17
    $region16: #{tpu_custom_call.1} parent=1 // pred_region
      %37 = dma.done [#allocation4], 256
    $region17: #{tpu_custom_call.1} parent=1 // pred_fallthru
      _
    %38 = vsyncpa [#allocation3], 1
    %39 = vsyncpa [#allocation4], 1

</llo_original>
